<compile_context>
chip_gen: v5e
topology: v5e:2x2
jax: 0.10.0
libtpu: 0.0.40
codegen_flags: <defaults>
</compile_context>

<pallas_src>
import functools
import numpy as np
import jax
import jax.numpy as jnp
from jax.experimental import pallas as pl
from jax.experimental.pallas import tpu as pltpu

C3, C4, C5 = 192, 384, 768          # stage3 / stage4 / stage5 channels
CTOT = C3 + C4 + C5                 # 1344 == self.total_channels
REDUCTION = 8


# --------------------------------------------------------------------------- #
# Small helpers
# --------------------------------------------------------------------------- #
def _round_up(x, m):
    return ((x + m - 1) // m) * m


@functools.lru_cache(maxsize=None)
def _vmem_limit_bytes():
    """Per-generation scoped VMEM limit: 64 MiB on v5e/v6e, ~48 MiB on v7x."""
    cap = 0
    try:
        cap = int(getattr(pltpu.get_tpu_info(), "vmem_capacity_bytes", 0))
    except Exception:
        cap = 0
    if cap <= 0:
        return 48 * 1024 * 1024
    return min(64 * 1024 * 1024, (cap * 3) // 4)


@functools.lru_cache(maxsize=None)
def _interp_matrix_1d(out_size, in_size):
    """1-D bilinear weights, PyTorch align_corners=True semantics. Cached."""
    m = np.zeros((out_size, in_size), dtype=np.float32)
    for o in range(out_size):
        pos = 0.0 if out_size == 1 else o * (in_size - 1) / (out_size - 1)
        i0 = min(int(np.floor(pos)), in_size - 1)
        i1 = min(i0 + 1, in_size - 1)
        w1 = pos - i0
        m[o, i0] += 1.0 - w1
        m[o, i1] += w1
    return jnp.asarray(m)


# --------------------------------------------------------------------------- #
# Pallas kernel 1: patch-embed "conv" as row-tiled matmul + bias + GELU
# --------------------------------------------------------------------------- #
def _patch_linear_kernel(x_ref, w_ref, b_ref, o_ref):
    # bf16 operands, f32 MXU accumulation, f32 epilogue.
    y = jnp.dot(x_ref[...], w_ref[...], preferred_element_type=jnp.float32)
    y = y + b_ref[...]
    # TODO(synk): torch nn.GELU default is exact erf; tanh approximation used here.
    o_ref[...] = jax.nn.gelu(y, approximate=True).astype(o_ref.dtype)


def patch_linear(x, w, b, tm=512):
    """x: (R, K) bf16 patches, w: (K, C) bf16, b: (C,) f32 -> (R, C) f32."""
    R, K = x.shape
    C = w.shape[1]
    tm = min(tm, _round_up(R, 8))          # row tile, 8-aligned, <= 512
    grid = (pl.cdiv(R, tm),)
    return pl.pallas_call(
        _patch_linear_kernel,
        out_shape=jax.ShapeDtypeStruct((R, C), jnp.float32),
        grid=grid,
        in_specs=[pl.BlockSpec((tm, K), lambda i: (i, 0)),      # streamed rows
                  pl.BlockSpec((K, C), lambda i: (0, 0)),       # resident weight
                  pl.BlockSpec((1, C), lambda i: (0, 0))],      # resident bias
        out_specs=pl.BlockSpec((tm, C), lambda i: (i, 0)),
        compiler_params=pltpu.CompilerParams(
            dimension_semantics=("parallel",),
            vmem_limit_bytes=_vmem_limit_bytes()),
    )(x, w, b.reshape(1, C))


# --------------------------------------------------------------------------- #
# Pallas kernel 2: separable bilinear resize of the pyramid, fused concat
# --------------------------------------------------------------------------- #
def _make_resize_concat_kernel(*, oh, ow, t_oh, h3, w3, h4, w4, h5, w5,
                               s3_identity):
    def _sep_resize(my_blk, mx, f_flat, iw, c):
        # y-interp: (t_oh, ih) @ (ih, iw*c) -> (t_oh, iw*c)
        t = jnp.dot(my_blk, f_flat, preferred_element_type=jnp.float32)
        t = t.reshape(t_oh, iw, c)
        # x-interp as batched matmul over the t_oh output rows.
        mx_b = jnp.broadcast_to(mx, (t_oh, ow, iw))
        o = jnp.einsum('yoi,yic->yoc', mx_b, t,
                       preferred_element_type=jnp.float32)
        return o.reshape(t_oh * ow, c)

    if s3_identity:
        def kernel(my4_ref, mx4_ref, my5_ref, mx5_ref,
                   f3_ref, f4_ref, f5_ref, o_ref):
            o3 = f3_ref[0]                                        # identity resize
            o4 = _sep_resize(my4_ref[...], mx4_ref[...], f4_ref[0], w4, C4)
            o5 = _sep_resize(my5_ref[...], mx5_ref[...], f5_ref[0], w5, C5)
            o_ref[0] = jnp.concatenate([o3, o4, o5], axis=-1)
    else:
        def kernel(my3_ref, mx3_ref, my4_ref, mx4_ref, my5_ref, mx5_ref,
                   f3_ref, f4_ref, f5_ref, o_ref):
            o3 = _sep_resize(my3_ref[...], mx3_ref[...], f3_ref[0], w3, C3)
            o4 = _sep_resize(my4_ref[...], mx4_ref[...], f4_ref[0], w4, C4)
            o5 = _sep_resize(my5_ref[...], mx5_ref[...], f5_ref[0], w5, C5)
            o_ref[0] = jnp.concatenate([o3, o4, o5], axis=-1)
    return kernel


def _choose_oh_tile(oh, ow):
    # Single tile if the full (oh*ow, 1344) slab is small; otherwise split oh
    # into multiples of 8 so block dims stay 8-aligned.
    if oh * ow * CTOT * 4 <= (8 << 20) or oh < 16:
        return oh
    t = (8 << 20) // (ow * CTOT * 4)
    t = max(8, (t // 8) * 8)
    return min(t, oh)


def resize_concat(s3, s4, s5, oh, ow):
    """s3/s4/s5: (N, hi, wi, Ci) f32 -> (N, oh*ow, 1344) f32 (concat inside)."""
    N, h3, w3, _ = s3.shape
    _, h4, w4, _ = s4.shape
    _, h5, w5, _ = s5.shape
    OP = oh * ow
    s3_identity = (oh == h3 and ow == w3)

    t_oh = _choose_oh_tile(oh, ow)
    grid = (N, pl.cdiv(oh, t_oh))

    my4, mx4 = _interp_matrix_1d(oh, h4), _interp_matrix_1d(ow, w4)
    my5, mx5 = _interp_matrix_1d(oh, h5), _interp_matrix_1d(ow, w5)
    f4 = s4.reshape(N, h4, w4 * C4)       # free, contiguous reshapes in HBM
    f5 = s5.reshape(N, h5, w5 * C5)

    common_specs = [
        pl.BlockSpec((t_oh, h4), lambda n, t: (t, 0)),
        pl.BlockSpec((ow, w4), lambda n, t: (0, 0)),
        pl.BlockSpec((t_oh, h5), lambda n, t: (t, 0)),
        pl.BlockSpec((ow, w5), lambda n, t: (0, 0)),
    ]
    feat45_specs = [
        pl.BlockSpec((1, h4, w4 * C4), lambda n, t: (n, 0, 0)),
        pl.BlockSpec((1, h5, w5 * C5), lambda n, t: (n, 0, 0)),
    ]

    if s3_identity:
        in_specs = common_specs + [
            pl.BlockSpec((1, t_oh * ow, C3), lambda n, t: (n, t, 0)),
        ] + feat45_specs
        args = (my4, mx4, my5, mx5, s3.reshape(N, OP, C3), f4, f5)
    else:
        my3, mx3 = _interp_matrix_1d(oh, h3), _interp_matrix_1d(ow, w3)
        in_specs = ([pl.BlockSpec((t_oh, h3), lambda n, t: (t, 0)),
                     pl.BlockSpec((ow, w3), lambda n, t: (0, 0))]
                    + common_specs
                    + [pl.BlockSpec((1, h3, w3 * C3), lambda n, t: (n, 0, 0))]
                    + feat45_specs)
        args = (my3, mx3, my4, mx4, my5, mx5,
                s3.reshape(N, h3, w3 * C3), f4, f5)

    kernel = _make_resize_concat_kernel(
        oh=oh, ow=ow, t_oh=t_oh, h3=h3, w3=w3, h4=h4, w4=w4, h5=h5, w5=w5,
        s3_identity=s3_identity)

    return pl.pallas_call(
        kernel,
        out_shape=jax.ShapeDtypeStruct((N, OP, CTOT), jnp.float32),
        grid=grid,
        in_specs=in_specs,
        out_specs=pl.BlockSpec((1, t_oh * ow, CTOT), lambda n, t: (n, t, 0)),
        compiler_params=pltpu.CompilerParams(
            dimension_semantics=("parallel", "parallel"),
            vmem_limit_bytes=_vmem_limit_bytes()),
    )(*args)


# --------------------------------------------------------------------------- #
# Glue: patch extraction, parameter init
# --------------------------------------------------------------------------- #
def patchify_nchw(x, r):
    """(N, Cin, H, W) -> (N*(H//r)*(W//r), Cin*r*r)."""
    N, C, H, W = x.shape
    x = x.reshape(N, C, H // r, r, W // r, r)
    x = jnp.transpose(x, (0, 2, 4, 1, 3, 5))
    return x.reshape(N * (H // r) * (W // r), C * r * r)


def patchify_nhwc(f, r):
    """(N, H, W, C) -> (N*(H//r)*(W//r), r*r*C)."""
    N, H, W, C = f.shape
    f = f.reshape(N, H // r, r, W // r, r, C)
    f = jnp.transpose(f, (0, 1, 3, 2, 4, 5))
    return f.reshape(N * (H // r) * (W // r), r * r * C)


def init_params(key):
    ks = jax.random.split(key, 6)

    def lin(kw, kb, fan_in, fan_out):
        w = jax.random.normal(kw, (fan_in, fan_out), jnp.float32) * 0.02
        b = jax.random.normal(kb, (fan_out,), jnp.float32) * 0.02
        return w, b

    w3, b3 = lin(ks[0], ks[1], 3 * 8 * 8, C3)         # stride-8 patch embed
    w4, b4 = lin(ks[2], ks[3], 2 * 2 * C3, C4)        # 2x downsample
    w5, b5 = lin(ks[4], ks[5], 2 * 2 * C4, C5)        # 2x downsample
    return dict(w3=w3, b3=b3, w4=w4, b4=b4, w5=w5, b5=b5)


# --------------------------------------------------------------------------- #
# Forward pass (mirrors BackboneGroundingDINO.forward_concatenated)
# --------------------------------------------------------------------------- #
def backbone_grounding_dino_forward(params, x, reduction=REDUCTION):
    N, Cin, H, W = x.shape
    if Cin != 3:
        raise ValueError(f"expected 3 input channels, got {Cin}")
    if H % 32 or W % 32 or H % reduction or W % reduction:
        raise ValueError("H and W must be divisible by 32 and by `reduction` "
                         f"(got H={H}, W={W}, reduction={reduction})")

    bf16 = jnp.bfloat16
    w3b = params['w3'].astype(bf16)
    w4b = params['w4'].astype(bf16)
    w5b = params['w5'].astype(bf16)

    # ---- synthetic hierarchical backbone (stage3 / stage4 / stage5) ----
    h3, w3 = H // 8, W // 8
    s3 = patch_linear(patchify_nchw(x, 8).astype(bf16), w3b, params['b3'])
    s3 = s3.reshape(N, h3, w3, C3)

    h4, w4 = h3 // 2, w3 // 2
    s4 = patch_linear(patchify_nhwc(s3, 2).astype(bf16), w4b, params['b4'])
    s4 = s4.reshape(N, h4, w4, C4)

    h5, w5 = h4 // 2, w4 // 2
    s5 = patch_linear(patchify_nhwc(s4, 2).astype(bf16), w5b, params['b5'])
    s5 = s5.reshape(N, h5, w5, C5)

    # ---- separable bilinear resize (align_corners=True) + fused channel concat ----
    oh, ow = H // reduction, W // reduction
    out = resize_concat(s3, s4, s5, oh, ow)            # (N, oh*ow, 1344)

    # back to NCHW like torch.cat(..., dim=1)
    return out.reshape(N, oh, ow, CTOT).transpose(0, 3, 1, 2)


# --------------------------------------------------------------------------- #
# Pure-JAX reference (same synthetic weights) for the correctness check
# --------------------------------------------------------------------------- #
def _ref_forward(params, x, reduction=REDUCTION):
    N, _, H, W = x.shape
    bf16 = jnp.bfloat16
    hp = jax.lax.Precision.HIGHEST

    def lin(p, w, b):
        y = jnp.dot(p.astype(bf16), w.astype(bf16),
                    preferred_element_type=jnp.float32) + b
        return jax.nn.gelu(y, approximate=True)

    h3, w3 = H // 8, W // 8
    s3 = lin(patchify_nchw(x, 8), params['w3'], params['b3']).reshape(N, h3, w3, C3)
    h4, w4 = h3 // 2, w3 // 2
    s4 = lin(patchify_nhwc(s3, 2), params['w4'], params['b4']).reshape(N, h4, w4, C4)
    h5, w5 = h4 // 2, w4 // 2
    s5 = lin(patchify_nhwc(s4, 2), params['w5'], params['b5']).reshape(N, h5, w5, C5)

    oh, ow = H // reduction, W // reduction

    def resize(s):
        _, ih, iw, _ = s.shape
        my = _interp_matrix_1d(oh, ih)
        mx = _interp_matrix_1d(ow, iw)
        t = jnp.einsum('oy,nyxc->noxc', my, s, precision=hp)
        return jnp.einsum('px,noxc->nopc', mx, t, precision=hp)

    out = jnp.concatenate([resize(s3), resize(s4), resize(s5)], axis=-1)
    return out.transpose(0, 3, 1, 2)


# --------------------------------------------------------------------------- #
if __name__ == "__main__":
    key = jax.random.PRNGKey(0)
    kx, kp = jax.random.split(key)

    # Small input consistent with the module: NCHW, 3 channels, spatial
    # divisible by 32 (deepest stride). Output: (2, 1344, 8, 8).
    x = jax.random.normal(kx, (2, 3, 64, 64), jnp.float32)
    params = init_params(kp)

    out = jax.block_until_ready(backbone_grounding_dino_forward(params, x))
    assert out.shape == (2, CTOT, 64 // REDUCTION, 64 // REDUCTION), out.shape

    ref = jax.block_until_ready(_ref_forward(params, x))
    np.testing.assert_allclose(np.asarray(out), np.asarray(ref),
                               rtol=1e-2, atol=1e-2)

    print("KERNEL_OK")
</pallas_src>

<mosaic_0001>
module attributes {stable_mosaic.version = 11 : i64} {
  func.func @_patch_linear_kernel(%arg0: i32, %arg1: memref<128x192xbf16, #tpu.memory_space<vmem>>, %arg2: memref<192x192xbf16, #tpu.memory_space<vmem>>, %arg3: memref<1x192xf32, #tpu.memory_space<vmem>>, %arg4: memref<128x192xf32, #tpu.memory_space<vmem>>) attributes {dimension_semantics = [#tpu.dimension_semantics<parallel>], iteration_bounds = array<i64: 1>, scalar_prefetch = 0 : i64, scratch_operands = 0 : i64, tpu.core_type = #tpu.core_type<tc>, window_params = [{transform_indices = @transform_0, window_bounds = array<i64: 128, 192>}, {pipeline_mode = #tpu.pipeline_mode<synchronous>, transform_indices = @transform_1, window_bounds = array<i64: 192, 192>}, {pipeline_mode = #tpu.pipeline_mode<synchronous>, transform_indices = @transform_2, window_bounds = array<i64: 1, 192>}, {transform_indices = @transform_3, window_bounds = array<i64: 128, 192>}]} {
    %c0 = arith.constant 0 : index
    %c0_0 = arith.constant 0 : index
    %0 = vector.load %arg1[%c0, %c0_0] : memref<128x192xbf16, #tpu.memory_space<vmem>>, vector<128x192xbf16>
    %c0_1 = arith.constant 0 : index
    %c0_2 = arith.constant 0 : index
    %1 = vector.load %arg2[%c0_1, %c0_2] : memref<192x192xbf16, #tpu.memory_space<vmem>>, vector<192x192xbf16>
    %cst = arith.constant dense<0.000000e+00> : vector<128x192xf32>
    %2 = tpu.matmul %0, %1, %cst {dimension_numbers = #tpu.dot_dimension_numbers<[1], [0], [0], [1], [0, 0, 1, 1], [], []>} : vector<128x192xbf16>, vector<192x192xbf16>, vector<128x192xf32> -> vector<128x192xf32>
    %c0_3 = arith.constant 0 : index
    %c0_4 = arith.constant 0 : index
    %3 = vector.load %arg3[%c0_3, %c0_4] : memref<1x192xf32, #tpu.memory_space<vmem>>, vector<1x192xf32>
    %4 = vector.broadcast %3 : vector<1x192xf32> to vector<128x192xf32>
    %5 = arith.addf %2, %4 : vector<128x192xf32>
    %6 = arith.mulf %5, %5 : vector<128x192xf32>
    %7 = arith.mulf %5, %6 : vector<128x192xf32>
    %cst_5 = arith.constant 4.471500e-02 : f32
    %8 = vector.broadcast %cst_5 : f32 to vector<128x192xf32>
    %9 = arith.mulf %8, %7 : vector<128x192xf32>
    %10 = arith.addf %5, %9 : vector<128x192xf32>
    %cst_6 = arith.constant 0.797884583 : f32
    %11 = vector.broadcast %cst_6 : f32 to vector<128x192xf32>
    %12 = arith.mulf %11, %10 : vector<128x192xf32>
    %13 = math.tanh %12 : vector<128x192xf32>
    %cst_7 = arith.constant 1.000000e+00 : f32
    %14 = vector.broadcast %cst_7 : f32 to vector<128x192xf32>
    %15 = arith.addf %14, %13 : vector<128x192xf32>
    %cst_8 = arith.constant 5.000000e-01 : f32
    %16 = vector.broadcast %cst_8 : f32 to vector<128x192xf32>
    %17 = arith.mulf %16, %15 : vector<128x192xf32>
    %18 = arith.mulf %5, %17 : vector<128x192xf32>
    %c0_9 = arith.constant 0 : index
    %c0_10 = arith.constant 0 : index
    %19 = vector.load %arg4[%c0_9, %c0_10] : memref<128x192xf32, #tpu.memory_space<vmem>>, vector<128x192xf32>
    tpu.vector_store %arg4[%c0_9, %c0_10], %18 {strides = array<i32>} : memref<128x192xf32, #tpu.memory_space<vmem>>, vector<128x192xf32>,
    return
  }
  func.func @transform_0(%arg0: i32) -> (i32, i32) {
    %c0_i32 = arith.constant 0 : i32
    %c0_i32_0 = arith.constant 0 : i32
    return %arg0, %c0_i32 : i32, i32
  }
  func.func @transform_1(%arg0: i32) -> (i32, i32) {
    %c0_i32 = arith.constant 0 : i32
    %c0_i32_0 = arith.constant 0 : i32
    %c0_i32_1 = arith.constant 0 : i32
    return %c0_i32, %c0_i32_0 : i32, i32
  }
  func.func @transform_2(%arg0: i32) -> (i32, i32) {
    %c0_i32 = arith.constant 0 : i32
    %c0_i32_0 = arith.constant 0 : i32
    %c0_i32_1 = arith.constant 0 : i32
    return %c0_i32, %c0_i32_0 : i32, i32
  }
  func.func @transform_3(%arg0: i32) -> (i32, i32) {
    %c0_i32 = arith.constant 0 : i32
    %c0_i32_0 = arith.constant 0 : i32
    return %arg0, %c0_i32 : i32, i32
  }
}

</mosaic_0001>

<llo_original>
// kernel: tpu_custom_call.1
$region0: #{tpu_custom_call.1}
  #allocation0 [shape = 'u32[]', space=smem, size = 0x4, offset = 0x4, fixed_abs, tag = 'smem constant byte address 0x4 - core index']
  #allocation1 [shape = 'u32[72,128]{1,0:T(1,128)}', space=vmem, size = 0x9000, scoped, tag = 'internal scratch']
  %s0 = inlined_call_operand.vmem [shape: bf16[128,192], index: 0, kind: input, shape index: {}]
  %s1 = inlined_call_operand.vmem [shape: bf16[192,192], index: 1, kind: input, shape index: {}]
  %s2 = inlined_call_operand.vmem [shape: f32[1,192], index: 2, kind: input, shape index: {}]
  %s3 = inlined_call_operand.vmem [shape: f32[128,192], index: 3, kind: output, shape index: {}]
  %s4 = sld [smem:[#allocation0]]
  $region22: #{tpu_custom_call.1} parent=0
    _
  %s6 = ssub.s32 1, %s4
  %s7 = scalar_select 0, %s6, %s4
  // Predicated region
  $region2: #{tpu_custom_call.1} parent=0 // pred_check
    _
  $region3: #{tpu_custom_call.1} parent=0 // pred_check_branch
    %9 = sbr.rel (0) target = $region5
  $region4: #{tpu_custom_call.1} parent=0 // pred_region
    _
  $region5: #{tpu_custom_call.1} parent=0 // pred_fallthru
    _
  // Predicated region
  $region6: #{tpu_custom_call.1} parent=0 // pred_check
    _
  $region7: #{tpu_custom_call.1} parent=0 // pred_check_branch
    %11 = sbr.rel (0) target = $region9
  $region8: #{tpu_custom_call.1} parent=0 // pred_region
    _
  $region9: #{tpu_custom_call.1} parent=0 // pred_fallthru
    _
  // Predicated region
  $region10: #{tpu_custom_call.1} parent=0 // pred_check
    _
  $region11: #{tpu_custom_call.1} parent=0 // pred_check_branch
    %13 = sbr.rel (0) target = $region13
  $region12: #{tpu_custom_call.1} parent=0 // pred_region
    _
  $region13: #{tpu_custom_call.1} parent=0 // pred_fallthru
    _
  %v15 = vld [vmem:[%s0] sm:$0xff]
  %v16 = vld [vmem:[%s0 + $0x8] sm:$0xff]
  %v17 = vld [vmem:[%s0 + $0x10] sm:$0xff]
  %v18 = vld [vmem:[%s0 + $0x18] sm:$0xff]
  %v19 = vld [vmem:[%s0 + $0x20] sm:$0xff]
  %v20 = vld [vmem:[%s0 + $0x28] sm:$0xff]
  %v21 = vld [vmem:[%s0 + $0x30] sm:$0xff]
  %v22 = vld [vmem:[%s0 + $0x38] sm:$0xff]
  %v23 = vld [vmem:[%s0 + $0x40] sm:$0xff]
  %v24 = vld [vmem:[%s0 + $0x48] sm:$0xff]
  %v25 = vld [vmem:[%s0 + $0x50] sm:$0xff]
  %v26 = vld [vmem:[%s0 + $0x58] sm:$0xff]
  %v27 = vld [vmem:[%s0 + $0x60] sm:$0xff]
  %v28 = vld [vmem:[%s0 + $0x68] sm:$0xff]
  %v29 = vld [vmem:[%s0 + $0x70] sm:$0xff]
  %v30 = vld [vmem:[%s0 + $0x78] sm:$0xff]
  %v31 = vld [vmem:[%s1] sm:$0xff]
  %v32 = vld [vmem:[%s1 + $0x8] sm:$0xff]
  %v33 = vld [vmem:[%s1 + $0x10] sm:$0xff]
  %v34 = vld [vmem:[%s1 + $0x18] sm:$0xff]
  %v35 = vld [vmem:[%s1 + $0x20] sm:$0xff]
  %v36 = vld [vmem:[%s1 + $0x28] sm:$0xff]
  %v37 = vld [vmem:[%s1 + $0x30] sm:$0xff]
  %v38 = vld [vmem:[%s1 + $0x38] sm:$0xff]
  %v39 = vld [vmem:[%s1 + $0x40] sm:$0xff]
  %v40 = vld [vmem:[%s1 + $0x48] sm:$0xff]
  %v41 = vld [vmem:[%s1 + $0x50] sm:$0xff]
  %v42 = vld [vmem:[%s1 + $0x58] sm:$0xff]
  %v43 = vld [vmem:[%s1 + $0x60] sm:$0xff]
  %v44 = vld [vmem:[%s1 + $0x68] sm:$0xff]
  %v45 = vld [vmem:[%s1 + $0x70] sm:$0xff]
  %v46 = vld [vmem:[%s1 + $0x78] sm:$0xff]
  %v47 = vld [vmem:[%s1 + $0x80] sm:$0xff]
  %v48 = vld [vmem:[%s1 + $0x88] sm:$0xff]
  %v49 = vld [vmem:[%s1 + $0x90] sm:$0xff]
  %v50 = vld [vmem:[%s1 + $0x98] sm:$0xff]
  %v51 = vld [vmem:[%s1 + $0xa0] sm:$0xff]
  %v52 = vld [vmem:[%s1 + $0xa8] sm:$0xff]
  %v53 = vld [vmem:[%s1 + $0xb0] sm:$0xff]
  %v54 = vld [vmem:[%s1 + $0xb8] sm:$0xff]
  %v55 = vld [vmem:[%s2] sm:$0x3]
  %v57 = vperm.slane %v55, 0
  %v58 = vperm.slane %v55, 1
  %v77 = vunpack.c.l.b16 %v15
  %v78 = vunpack.c.h.b16 %v15
  %v79 = vunpack.c.l.b16 %v16
  %v80 = vunpack.c.h.b16 %v16
  %v81 = vunpack.c.l.b16 %v17
  %v82 = vunpack.c.h.b16 %v17
  %v83 = vunpack.c.l.b16 %v18
  %v84 = vunpack.c.h.b16 %v18
  %v85 = vunpack.c.l.b16 %v19
  %v86 = vunpack.c.h.b16 %v19
  %v87 = vunpack.c.l.b16 %v20
  %v88 = vunpack.c.h.b16 %v20
  %v89 = vunpack.c.l.b16 %v21
  %v90 = vunpack.c.h.b16 %v21
  %v91 = vunpack.c.l.b16 %v22
  %v92 = vunpack.c.h.b16 %v22
  %v93 = vunpack.c.l.b16 %v23
  %v94 = vunpack.c.h.b16 %v23
  %v95 = vunpack.c.l.b16 %v24
  %v96 = vunpack.c.h.b16 %v24
  %v97 = vunpack.c.l.b16 %v25
  %v98 = vunpack.c.h.b16 %v25
  %v99 = vunpack.c.l.b16 %v26
  %v100 = vunpack.c.h.b16 %v26
  %v101 = vunpack.c.l.b16 %v27
  %v102 = vunpack.c.h.b16 %v27
  %v103 = vunpack.c.l.b16 %v28
  %v104 = vunpack.c.h.b16 %v28
  %v105 = vunpack.c.l.b16 %v29
  %v106 = vunpack.c.h.b16 %v29
  %v107 = vunpack.c.l.b16 %v30
  %v108 = vunpack.c.h.b16 %v30
  %v109 = vpack.c.b16 %v79, %v77
  %v110 = vpack.c.b16 %v80, %v78
  %v111 = vpack.c.b16 %v83, %v81
  %v112 = vpack.c.b16 %v84, %v82
  %v113 = vpack.c.b16 %v87, %v85
  %v114 = vpack.c.b16 %v88, %v86
  %v115 = vpack.c.b16 %v91, %v89
  %v116 = vpack.c.b16 %v92, %v90
  %v117 = vpack.c.b16 %v95, %v93
  %v118 = vpack.c.b16 %v96, %v94
  %v119 = vpack.c.b16 %v99, %v97
  %v120 = vpack.c.b16 %v100, %v98
  %v121 = vpack.c.b16 %v103, %v101
  %v122 = vpack.c.b16 %v104, %v102
  %v123 = vpack.c.b16 %v107, %v105
  %v124 = vpack.c.b16 %v108, %v106
  %v157 = vunpack.c.l.b16 %v31
  %v158 = vunpack.c.h.b16 %v31
  %v159 = vunpack.c.l.b16 %v32
  %v160 = vunpack.c.h.b16 %v32
  %v161 = vunpack.c.l.b16 %v33
  %v162 = vunpack.c.h.b16 %v33
  %v163 = vunpack.c.l.b16 %v34
  %v164 = vunpack.c.h.b16 %v34
  %v165 = vunpack.c.l.b16 %v35
  %v166 = vunpack.c.h.b16 %v35
  %v167 = vunpack.c.l.b16 %v36
  %v168 = vunpack.c.h.b16 %v36
  %v169 = vunpack.c.l.b16 %v37
  %v170 = vunpack.c.h.b16 %v37
  %v171 = vunpack.c.l.b16 %v38
  %v172 = vunpack.c.h.b16 %v38
  %v173 = vunpack.c.l.b16 %v39
  %v174 = vunpack.c.h.b16 %v39
  %v175 = vunpack.c.l.b16 %v40
  %v176 = vunpack.c.h.b16 %v40
  %v177 = vunpack.c.l.b16 %v41
  %v178 = vunpack.c.h.b16 %v41
  %v179 = vunpack.c.l.b16 %v42
  %v180 = vunpack.c.h.b16 %v42
  %v181 = vunpack.c.l.b16 %v43
  %v182 = vunpack.c.h.b16 %v43
  %v183 = vunpack.c.l.b16 %v44
  %v184 = vunpack.c.h.b16 %v44
  %v185 = vunpack.c.l.b16 %v45
  %v186 = vunpack.c.h.b16 %v45
  %v187 = vunpack.c.l.b16 %v46
  %v188 = vunpack.c.h.b16 %v46
  %v189 = vunpack.c.l.b16 %v47
  %v190 = vunpack.c.h.b16 %v47
  %v191 = vunpack.c.l.b16 %v48
  %v192 = vunpack.c.h.b16 %v48
  %v193 = vunpack.c.l.b16 %v49
  %v194 = vunpack.c.h.b16 %v49
  %v195 = vunpack.c.l.b16 %v50
  %v196 = vunpack.c.h.b16 %v50
  %v197 = vunpack.c.l.b16 %v51
  %v198 = vunpack.c.h.b16 %v51
  %v199 = vunpack.c.l.b16 %v52
  %v200 = vunpack.c.h.b16 %v52
  %v201 = vunpack.c.l.b16 %v53
  %v202 = vunpack.c.h.b16 %v53
  %v203 = vunpack.c.l.b16 %v54
  %v204 = vunpack.c.h.b16 %v54
  %v205 = vpack.c.b16 %v159, %v157
  %v206 = vpack.c.b16 %v160, %v158
  %v207 = vpack.c.b16 %v163, %v161
  %v208 = vpack.c.b16 %v164, %v162
  %v209 = vpack.c.b16 %v167, %v165
  %v210 = vpack.c.b16 %v168, %v166
  %v211 = vpack.c.b16 %v171, %v169
  %v212 = vpack.c.b16 %v172, %v170
  %v213 = vpack.c.b16 %v175, %v173
  %v214 = vpack.c.b16 %v176, %v174
  %v215 = vpack.c.b16 %v179, %v177
  %v216 = vpack.c.b16 %v180, %v178
  %v217 = vpack.c.b16 %v183, %v181
  %v218 = vpack.c.b16 %v184, %v182
  %v219 = vpack.c.b16 %v187, %v185
  %v220 = vpack.c.b16 %v188, %v186
  %v221 = vpack.c.b16 %v191, %v189
  %v222 = vpack.c.b16 %v192, %v190
  %v223 = vpack.c.b16 %v195, %v193
  %v224 = vpack.c.b16 %v196, %v194
  %v225 = vpack.c.b16 %v199, %v197
  %v226 = vpack.c.b16 %v200, %v198
  %v227 = vpack.c.b16 %v203, %v201
  %v228 = vpack.c.b16 %v204, %v202
  %vm253 = vcmask 523264
  %v255 = vsel %vm253, %v110, 0
  %v258 = vsel %vm253, %v112, 0
  %v261 = vsel %vm253, %v114, 0
  %v264 = vsel %vm253, %v116, 0
  %v267 = vsel %vm253, %v118, 0
  %v270 = vsel %vm253, %v120, 0
  %v273 = vsel %vm253, %v122, 0
  %v276 = vsel %vm253, %v124, 0
  %278 = vmatpush.bf16.msra.mxu0 %v219
  %279 = vmatpush.bf16.msra.mxu0 %v217
  %280 = vmatpush.bf16.msra.mxu0 %v215
  %281 = vmatpush.bf16.msra.mxu0 %v213
  %282 = vmatpush.bf16.msra.mxu0 %v211
  %283 = vmatpush.bf16.msra.mxu0 %v209
  %284 = vmatpush.bf16.msra.mxu0 %v207
  %285 = vmatpush.bf16.msra.mxu0 %v205
  %286 = vmatmul.bf16.gmra.mxu0 %v109
  %v287 = vpop.f32.mrf.mxu0
  %v288 = vadd.f32 %v57, %v287
  %v289 = vpop.f32.mrf.mxu0
  %v290 = vadd.f32 %v57, %v289
  %291 = vmatmul.bf16.gmra.mxu0 %v111
  %v292 = vpop.f32.mrf.mxu0
  %v293 = vadd.f32 %v57, %v292
  %v294 = vpop.f32.mrf.mxu0
  %v295 = vadd.f32 %v57, %v294
  %296 = vmatmul.bf16.gmra.mxu0 %v113
  %v297 = vpop.f32.mrf.mxu0
  %v298 = vadd.f32 %v57, %v297
  %v299 = vpop.f32.mrf.mxu0
  %v300 = vadd.f32 %v57, %v299
  %301 = vmatmul.bf16.gmra.mxu0 %v115
  %v302 = vpop.f32.mrf.mxu0
  %v303 = vadd.f32 %v57, %v302
  %v304 = vpop.f32.mrf.mxu0
  %v305 = vadd.f32 %v57, %v304
  %306 = vmatmul.bf16.gmra.mxu0 %v117
  %v307 = vpop.f32.mrf.mxu0
  %v308 = vadd.f32 %v57, %v307
  %v309 = vpop.f32.mrf.mxu0
  %v310 = vadd.f32 %v57, %v309
  %311 = vmatmul.bf16.gmra.mxu0 %v119
  %v312 = vpop.f32.mrf.mxu0
  %v313 = vadd.f32 %v57, %v312
  %v314 = vpop.f32.mrf.mxu0
  %v315 = vadd.f32 %v57, %v314
  %316 = vmatmul.bf16.gmra.mxu0 %v121
  %v317 = vpop.f32.mrf.mxu0
  %v318 = vadd.f32 %v57, %v317
  %v319 = vpop.f32.mrf.mxu0
  %v320 = vadd.f32 %v57, %v319
  %321 = vmatmul.bf16.gmra.mxu0 %v123
  %v322 = vpop.f32.mrf.mxu0
  %v323 = vadd.f32 %v57, %v322
  %v324 = vpop.f32.mrf.mxu0
  %v325 = vadd.f32 %v57, %v324
  %326 = vdwg.mxu0
  %327 = vmatpush.bf16.msra.mxu0 0
  %328 = vmatpush.bf16.msra.mxu0 0
  %329 = vmatpush.bf16.msra.mxu0 0
  %330 = vmatpush.bf16.msra.mxu0 0
  %331 = vmatpush.bf16.msra.mxu0 %v227
  %332 = vmatpush.bf16.msra.mxu0 %v225
  %333 = vmatpush.bf16.msra.mxu0 %v223
  %334 = vmatpush.bf16.msra.mxu0 %v221
  %335 = vmatmul.bf16.gmra.mxu0 %v255
  %v336 = vpop.f32.mrf.mxu0
  %v337 = vadd.f32 %v288, %v336
  %v338 = vpop.f32.mrf.mxu0
  %v339 = vadd.f32 %v290, %v338
  %340 = vmatmul.bf16.gmra.mxu0 %v258
  %v341 = vpop.f32.mrf.mxu0
  %v342 = vadd.f32 %v293, %v341
  %v343 = vpop.f32.mrf.mxu0
  %v344 = vadd.f32 %v295, %v343
  %345 = vmatmul.bf16.gmra.mxu0 %v261
  %v346 = vpop.f32.mrf.mxu0
  %v347 = vadd.f32 %v298, %v346
  %v348 = vpop.f32.mrf.mxu0
  %v349 = vadd.f32 %v300, %v348
  %350 = vmatmul.bf16.gmra.mxu0 %v264
  %v351 = vpop.f32.mrf.mxu0
  %v352 = vadd.f32 %v303, %v351
  %v353 = vpop.f32.mrf.mxu0
  %v354 = vadd.f32 %v305, %v353
  %355 = vmatmul.bf16.gmra.mxu0 %v267
  %v356 = vpop.f32.mrf.mxu0
  %v357 = vadd.f32 %v308, %v356
  %v358 = vpop.f32.mrf.mxu0
  %v359 = vadd.f32 %v310, %v358
  %360 = vmatmul.bf16.gmra.mxu0 %v270
  %v361 = vpop.f32.mrf.mxu0
  %v362 = vadd.f32 %v313, %v361
  %v363 = vpop.f32.mrf.mxu0
  %v364 = vadd.f32 %v315, %v363
  %365 = vmatmul.bf16.gmra.mxu0 %v273
  %v366 = vpop.f32.mrf.mxu0
  %v367 = vadd.f32 %v318, %v366
  %v368 = vpop.f32.mrf.mxu0
  %v369 = vadd.f32 %v320, %v368
  %370 = vmatmul.bf16.gmra.mxu0 %v276
  %v371 = vpop.f32.mrf.mxu0
  %v372 = vadd.f32 %v323, %v371
  %v373 = vpop.f32.mrf.mxu0
  %v374 = vadd.f32 %v325, %v373
  %375 = vdwg.mxu0
  %376 = vmatpush.bf16.msra.mxu0 %v220
  %377 = vmatpush.bf16.msra.mxu0 %v218
  %378 = vmatpush.bf16.msra.mxu0 %v216
  %379 = vmatpush.bf16.msra.mxu0 %v214
  %380 = vmatpush.bf16.msra.mxu0 %v212
  %381 = vmatpush.bf16.msra.mxu0 %v210
  %382 = vmatpush.bf16.msra.mxu0 %v208
  %383 = vmatpush.bf16.msra.mxu0 %v206
  %384 = vmatmul.bf16.gmra.mxu0 %v109
  %v385 = vpop.f32.mrf.mxu0
  %v386 = vadd.f32 %v58, %v385
  %v387 = vpop.f32.mrf.mxu0
  %v388 = vadd.f32 %v58, %v387
  %389 = vmatmul.bf16.gmra.mxu0 %v111
  %v390 = vpop.f32.mrf.mxu0
  %v391 = vadd.f32 %v58, %v390
  %v392 = vpop.f32.mrf.mxu0
  %v393 = vadd.f32 %v58, %v392
  %394 = vmatmul.bf16.gmra.mxu0 %v113
  %v395 = vpop.f32.mrf.mxu0
  %v396 = vadd.f32 %v58, %v395
  %v397 = vpop.f32.mrf.mxu0
  %v398 = vadd.f32 %v58, %v397
  %399 = vmatmul.bf16.gmra.mxu0 %v115
  %v400 = vpop.f32.mrf.mxu0
  %v401 = vadd.f32 %v58, %v400
  %v402 = vpop.f32.mrf.mxu0
  %v403 = vadd.f32 %v58, %v402
  %404 = vmatmul.bf16.gmra.mxu0 %v117
  %v405 = vpop.f32.mrf.mxu0
  %v406 = vadd.f32 %v58, %v405
  %v407 = vpop.f32.mrf.mxu0
  %v408 = vadd.f32 %v58, %v407
  %409 = vmatmul.bf16.gmra.mxu0 %v119
  %v410 = vpop.f32.mrf.mxu0
  %v411 = vadd.f32 %v58, %v410
  %v412 = vpop.f32.mrf.mxu0
  %v413 = vadd.f32 %v58, %v412
  %414 = vmatmul.bf16.gmra.mxu0 %v121
  %v415 = vpop.f32.mrf.mxu0
  %v416 = vadd.f32 %v58, %v415
  %v417 = vpop.f32.mrf.mxu0
  %v418 = vadd.f32 %v58, %v417
  %419 = vmatmul.bf16.gmra.mxu0 %v123
  %v420 = vpop.f32.mrf.mxu0
  %v421 = vadd.f32 %v58, %v420
  %v422 = vpop.f32.mrf.mxu0
  %v423 = vadd.f32 %v58, %v422
  %424 = vdwg.mxu0
  %425 = vmatpush.bf16.msra.mxu0 0
  %426 = vmatpush.bf16.msra.mxu0 0
  %427 = vmatpush.bf16.msra.mxu0 0
  %428 = vmatpush.bf16.msra.mxu0 0
  %429 = vmatpush.bf16.msra.mxu0 %v228
  %430 = vmatpush.bf16.msra.mxu0 %v226
  %431 = vmatpush.bf16.msra.mxu0 %v224
  %432 = vmatpush.bf16.msra.mxu0 %v222
  %433 = vmatmul.bf16.gmra.mxu0 %v255
  %v434 = vpop.f32.mrf.mxu0
  %v435 = vadd.f32 %v386, %v434
  %v436 = vpop.f32.mrf.mxu0
  %v437 = vadd.f32 %v388, %v436
  %438 = vmatmul.bf16.gmra.mxu0 %v258
  %v439 = vpop.f32.mrf.mxu0
  %v440 = vadd.f32 %v391, %v439
  %v441 = vpop.f32.mrf.mxu0
  %v442 = vadd.f32 %v393, %v441
  %443 = vmatmul.bf16.gmra.mxu0 %v261
  %v444 = vpop.f32.mrf.mxu0
  %v445 = vadd.f32 %v396, %v444
  %v446 = vpop.f32.mrf.mxu0
  %v447 = vadd.f32 %v398, %v446
  %448 = vmatmul.bf16.gmra.mxu0 %v264
  %v449 = vpop.f32.mrf.mxu0
  %v450 = vadd.f32 %v401, %v449
  %v451 = vpop.f32.mrf.mxu0
  %v452 = vadd.f32 %v403, %v451
  %453 = vmatmul.bf16.gmra.mxu0 %v267
  %v454 = vpop.f32.mrf.mxu0
  %v455 = vadd.f32 %v406, %v454
  %v456 = vpop.f32.mrf.mxu0
  %v457 = vadd.f32 %v408, %v456
  %458 = vmatmul.bf16.gmra.mxu0 %v270
  %v459 = vpop.f32.mrf.mxu0
  %v460 = vadd.f32 %v411, %v459
  %v461 = vpop.f32.mrf.mxu0
  %v462 = vadd.f32 %v413, %v461
  %463 = vmatmul.bf16.gmra.mxu0 %v273
  %v464 = vpop.f32.mrf.mxu0
  %v465 = vadd.f32 %v416, %v464
  %v466 = vpop.f32.mrf.mxu0
  %v467 = vadd.f32 %v418, %v466
  %468 = vmatmul.bf16.gmra.mxu0 %v276
  %v469 = vpop.f32.mrf.mxu0
  %v470 = vadd.f32 %v421, %v469
  %v471 = vpop.f32.mrf.mxu0
  %v472 = vadd.f32 %v423, %v471
  %473 = vdwg.mxu0
  %v474 = vmul.f32 %v337, %v337
  %v475 = vmul.f32 %v435, %v435
  %v476 = vmul.f32 %v339, %v339
  %v477 = vmul.f32 %v437, %v437
  %v478 = vmul.f32 %v342, %v342
  %v479 = vmul.f32 %v440, %v440
  %v480 = vmul.f32 %v344, %v344
  %v481 = vmul.f32 %v442, %v442
  %v482 = vmul.f32 %v347, %v347
  %v483 = vmul.f32 %v445, %v445
  %v484 = vmul.f32 %v349, %v349
  %v485 = vmul.f32 %v447, %v447
  %v486 = vmul.f32 %v352, %v352
  %v487 = vmul.f32 %v450, %v450
  %v488 = vmul.f32 %v354, %v354
  %v489 = vmul.f32 %v452, %v452
  %v490 = vmul.f32 %v357, %v357
  %v491 = vmul.f32 %v455, %v455
  %v492 = vmul.f32 %v359, %v359
  %v493 = vmul.f32 %v457, %v457
  %v494 = vmul.f32 %v362, %v362
  %v495 = vmul.f32 %v460, %v460
  %v496 = vmul.f32 %v364, %v364
  %v497 = vmul.f32 %v462, %v462
  %v498 = vmul.f32 %v367, %v367
  %v499 = vmul.f32 %v465, %v465
  %v500 = vmul.f32 %v369, %v369
  %v501 = vmul.f32 %v467, %v467
  %v502 = vmul.f32 %v372, %v372
  %v503 = vmul.f32 %v470, %v470
  %v504 = vmul.f32 %v374, %v374
  %v505 = vmul.f32 %v472, %v472
  %v506 = vmul.f32 %v337, %v474
  %v507 = vmul.f32 %v435, %v475
  %v508 = vmul.f32 %v339, %v476
  %v509 = vmul.f32 %v437, %v477
  %v510 = vmul.f32 %v342, %v478
  %v511 = vmul.f32 %v440, %v479
  %v512 = vmul.f32 %v344, %v480
  %v513 = vmul.f32 %v442, %v481
  %v514 = vmul.f32 %v347, %v482
  %v515 = vmul.f32 %v445, %v483
  %v516 = vmul.f32 %v349, %v484
  %v517 = vmul.f32 %v447, %v485
  %v518 = vmul.f32 %v352, %v486
  %v519 = vmul.f32 %v450, %v487
  %v520 = vmul.f32 %v354, %v488
  %v521 = vmul.f32 %v452, %v489
  %v522 = vmul.f32 %v357, %v490
  %v523 = vmul.f32 %v455, %v491
  %v524 = vmul.f32 %v359, %v492
  %v525 = vmul.f32 %v457, %v493
  %v526 = vmul.f32 %v362, %v494
  %v527 = vmul.f32 %v460, %v495
  %v528 = vmul.f32 %v364, %v496
  %v529 = vmul.f32 %v462, %v497
  %v530 = vmul.f32 %v367, %v498
  %v531 = vmul.f32 %v465, %v499
  %v532 = vmul.f32 %v369, %v500
  %v533 = vmul.f32 %v467, %v501
  %v534 = vmul.f32 %v372, %v502
  %v535 = vmul.f32 %v470, %v503
  %v536 = vmul.f32 %v374, %v504
  %v537 = vmul.f32 %v472, %v505
  %v538 = vmul.f32 %v506, 0.044715
  %v539 = vmul.f32 %v507, 0.044715
  %v540 = vmul.f32 %v508, 0.044715
  %v541 = vmul.f32 %v509, 0.044715
  %v542 = vmul.f32 %v510, 0.044715
  %v543 = vmul.f32 %v511, 0.044715
  %v544 = vmul.f32 %v512, 0.044715
  %v545 = vmul.f32 %v513, 0.044715
  %v546 = vmul.f32 %v514, 0.044715
  %v547 = vmul.f32 %v515, 0.044715
  %v548 = vmul.f32 %v516, 0.044715
  %v549 = vmul.f32 %v517, 0.044715
  %v550 = vmul.f32 %v518, 0.044715
  %v551 = vmul.f32 %v519, 0.044715
  %v552 = vmul.f32 %v520, 0.044715
  %v553 = vmul.f32 %v521, 0.044715
  %v554 = vmul.f32 %v522, 0.044715
  %v555 = vmul.f32 %v523, 0.044715
  %v556 = vmul.f32 %v524, 0.044715
  %v557 = vmul.f32 %v525, 0.044715
  %v558 = vmul.f32 %v526, 0.044715
  %v559 = vmul.f32 %v527, 0.044715
  %v560 = vmul.f32 %v528, 0.044715
  %v561 = vmul.f32 %v529, 0.044715
  %v562 = vmul.f32 %v530, 0.044715
  %v563 = vmul.f32 %v531, 0.044715
  %v564 = vmul.f32 %v532, 0.044715
  %v565 = vmul.f32 %v533, 0.044715
  %v566 = vmul.f32 %v534, 0.044715
  %v567 = vmul.f32 %v535, 0.044715
  %v568 = vmul.f32 %v536, 0.044715
  %v569 = vmul.f32 %v537, 0.044715
  %v570 = vadd.f32 %v337, %v538
  %v571 = vadd.f32 %v435, %v539
  %v572 = vadd.f32 %v339, %v540
  %v573 = vadd.f32 %v437, %v541
  %v574 = vadd.f32 %v342, %v542
  %v575 = vadd.f32 %v440, %v543
  %v576 = vadd.f32 %v344, %v544
  %v577 = vadd.f32 %v442, %v545
  %v578 = vadd.f32 %v347, %v546
  %v579 = vadd.f32 %v445, %v547
  %v580 = vadd.f32 %v349, %v548
  %v581 = vadd.f32 %v447, %v549
  %v582 = vadd.f32 %v352, %v550
  %v583 = vadd.f32 %v450, %v551
  %v584 = vadd.f32 %v354, %v552
  %v585 = vadd.f32 %v452, %v553
  %v586 = vadd.f32 %v357, %v554
  %v587 = vadd.f32 %v455, %v555
  %v588 = vadd.f32 %v359, %v556
  %v589 = vadd.f32 %v457, %v557
  %v590 = vadd.f32 %v362, %v558
  %v591 = vadd.f32 %v460, %v559
  %v592 = vadd.f32 %v364, %v560
  %v593 = vadd.f32 %v462, %v561
  %v594 = vadd.f32 %v367, %v562
  %v595 = vadd.f32 %v465, %v563
  %v596 = vadd.f32 %v369, %v564
  %v597 = vadd.f32 %v467, %v565
  %v598 = vadd.f32 %v372, %v566
  %v599 = vadd.f32 %v470, %v567
  %v600 = vadd.f32 %v374, %v568
  %v601 = vadd.f32 %v472, %v569
  %v602 = vmul.f32 %v570, 0.7978846
  %v603 = vmul.f32 %v571, 0.7978846
  %v604 = vmul.f32 %v572, 0.7978846
  %v605 = vmul.f32 %v573, 0.7978846
  %v606 = vmul.f32 %v574, 0.7978846
  %v607 = vmul.f32 %v575, 0.7978846
  %v608 = vmul.f32 %v576, 0.7978846
  %v609 = vmul.f32 %v577, 0.7978846
  %v610 = vmul.f32 %v578, 0.7978846
  %v611 = vmul.f32 %v579, 0.7978846
  %v612 = vmul.f32 %v580, 0.7978846
  %v613 = vmul.f32 %v581, 0.7978846
  %v614 = vmul.f32 %v582, 0.7978846
  %v615 = vmul.f32 %v583, 0.7978846
  %v616 = vmul.f32 %v584, 0.7978846
  %v617 = vmul.f32 %v585, 0.7978846
  %v618 = vmul.f32 %v586, 0.7978846
  %v619 = vmul.f32 %v587, 0.7978846
  %v620 = vmul.f32 %v588, 0.7978846
  %v621 = vmul.f32 %v589, 0.7978846
  %v622 = vmul.f32 %v590, 0.7978846
  %v623 = vmul.f32 %v591, 0.7978846
  %v624 = vmul.f32 %v592, 0.7978846
  %v625 = vmul.f32 %v593, 0.7978846
  %v626 = vmul.f32 %v594, 0.7978846
  %v627 = vmul.f32 %v595, 0.7978846
  %v628 = vmul.f32 %v596, 0.7978846
  %v629 = vmul.f32 %v597, 0.7978846
  %v630 = vmul.f32 %v598, 0.7978846
  %v631 = vmul.f32 %v599, 0.7978846
  %v632 = vmul.f32 %v600, 0.7978846
  %v633 = vmul.f32 %v601, 0.7978846
  %v634 = vtanh.pop %v602
  %v635 = vtanh.pop %v603
  %v636 = vtanh.pop %v604
  %v637 = vtanh.pop %v605
  %v638 = vtanh.pop %v606
  %v639 = vtanh.pop %v607
  %v640 = vtanh.pop %v608
  %v641 = vtanh.pop %v609
  %v642 = vtanh.pop %v610
  %v643 = vtanh.pop %v611
  %v644 = vtanh.pop %v612
  %v645 = vtanh.pop %v613
  %v646 = vtanh.pop %v614
  %v647 = vtanh.pop %v615
  %v648 = vtanh.pop %v616
  %v649 = vtanh.pop %v617
  %v650 = vtanh.pop %v618
  %v651 = vtanh.pop %v619
  %v652 = vtanh.pop %v620
  %v653 = vtanh.pop %v621
  %v654 = vtanh.pop %v622
  %v655 = vtanh.pop %v623
  %v656 = vtanh.pop %v624
  %v657 = vtanh.pop %v625
  %v658 = vtanh.pop %v626
  %v659 = vtanh.pop %v627
  %v660 = vtanh.pop %v628
  %v661 = vtanh.pop %v629
  %v662 = vtanh.pop %v630
  %v663 = vtanh.pop %v631
  %v664 = vtanh.pop %v632
  %v665 = vtanh.pop %v633
  %v666 = vadd.f32 %v634, 1.0
  %v667 = vadd.f32 %v635, 1.0
  %v668 = vadd.f32 %v636, 1.0
  %v669 = vadd.f32 %v637, 1.0
  %v670 = vadd.f32 %v638, 1.0
  %v671 = vadd.f32 %v639, 1.0
  %v672 = vadd.f32 %v640, 1.0
  %v673 = vadd.f32 %v641, 1.0
  %v674 = vadd.f32 %v642, 1.0
  %v675 = vadd.f32 %v643, 1.0
  %v676 = vadd.f32 %v644, 1.0
  %v677 = vadd.f32 %v645, 1.0
  %v678 = vadd.f32 %v646, 1.0
  %v679 = vadd.f32 %v647, 1.0
  %v680 = vadd.f32 %v648, 1.0
  %v681 = vadd.f32 %v649, 1.0
  %v682 = vadd.f32 %v650, 1.0
  %v683 = vadd.f32 %v651, 1.0
  %v684 = vadd.f32 %v652, 1.0
  %v685 = vadd.f32 %v653, 1.0
  %v686 = vadd.f32 %v654, 1.0
  %v687 = vadd.f32 %v655, 1.0
  %v688 = vadd.f32 %v656, 1.0
  %v689 = vadd.f32 %v657, 1.0
  %v690 = vadd.f32 %v658, 1.0
  %v691 = vadd.f32 %v659, 1.0
  %v692 = vadd.f32 %v660, 1.0
  %v693 = vadd.f32 %v661, 1.0
  %v694 = vadd.f32 %v662, 1.0
  %v695 = vadd.f32 %v663, 1.0
  %v696 = vadd.f32 %v664, 1.0
  %v697 = vadd.f32 %v665, 1.0
  %v698 = vmul.f32 %v666, 0.5
  %v699 = vmul.f32 %v667, 0.5
  %v700 = vmul.f32 %v668, 0.5
  %v701 = vmul.f32 %v669, 0.5
  %v702 = vmul.f32 %v670, 0.5
  %v703 = vmul.f32 %v671, 0.5
  %v704 = vmul.f32 %v672, 0.5
  %v705 = vmul.f32 %v673, 0.5
  %v706 = vmul.f32 %v674, 0.5
  %v707 = vmul.f32 %v675, 0.5
  %v708 = vmul.f32 %v676, 0.5
  %v709 = vmul.f32 %v677, 0.5
  %v710 = vmul.f32 %v678, 0.5
  %v711 = vmul.f32 %v679, 0.5
  %v712 = vmul.f32 %v680, 0.5
  %v713 = vmul.f32 %v681, 0.5
  %v714 = vmul.f32 %v682, 0.5
  %v715 = vmul.f32 %v683, 0.5
  %v716 = vmul.f32 %v684, 0.5
  %v717 = vmul.f32 %v685, 0.5
  %v718 = vmul.f32 %v686, 0.5
  %v719 = vmul.f32 %v687, 0.5
  %v720 = vmul.f32 %v688, 0.5
  %v721 = vmul.f32 %v689, 0.5
  %v722 = vmul.f32 %v690, 0.5
  %v723 = vmul.f32 %v691, 0.5
  %v724 = vmul.f32 %v692, 0.5
  %v725 = vmul.f32 %v693, 0.5
  %v726 = vmul.f32 %v694, 0.5
  %v727 = vmul.f32 %v695, 0.5
  %v728 = vmul.f32 %v696, 0.5
  %v729 = vmul.f32 %v697, 0.5
  %v730 = vmul.f32 %v337, %v698
  %v731 = vmul.f32 %v435, %v699
  %v732 = vmul.f32 %v339, %v700
  %v733 = vmul.f32 %v437, %v701
  %v734 = vmul.f32 %v342, %v702
  %v735 = vmul.f32 %v440, %v703
  %v736 = vmul.f32 %v344, %v704
  %v737 = vmul.f32 %v442, %v705
  %v738 = vmul.f32 %v347, %v706
  %v739 = vmul.f32 %v445, %v707
  %v740 = vmul.f32 %v349, %v708
  %v741 = vmul.f32 %v447, %v709
  %v742 = vmul.f32 %v352, %v710
  %v743 = vmul.f32 %v450, %v711
  %v744 = vmul.f32 %v354, %v712
  %v745 = vmul.f32 %v452, %v713
  %v746 = vmul.f32 %v357, %v714
  %v747 = vmul.f32 %v455, %v715
  %v748 = vmul.f32 %v359, %v716
  %v749 = vmul.f32 %v457, %v717
  %v750 = vmul.f32 %v362, %v718
  %v751 = vmul.f32 %v460, %v719
  %v752 = vmul.f32 %v364, %v720
  %v753 = vmul.f32 %v462, %v721
  %v754 = vmul.f32 %v367, %v722
  %v755 = vmul.f32 %v465, %v723
  %v756 = vmul.f32 %v369, %v724
  %v757 = vmul.f32 %v467, %v725
  %v758 = vmul.f32 %v372, %v726
  %v759 = vmul.f32 %v470, %v727
  %v760 = vmul.f32 %v374, %v728
  %v761 = vmul.f32 %v472, %v729
  %762 = vst [vmem:[%s3] sm:$0xff] %v730
  %763 = vst.msk [vmem:[%s3 + $0x8] sm:$0xff] %vm253, %v731
  %764 = vst [vmem:[%s3 + $0x10] sm:$0xff] %v732
  %765 = vst.msk [vmem:[%s3 + $0x18] sm:$0xff] %vm253, %v733
  %766 = vst [vmem:[%s3 + $0x20] sm:$0xff] %v734
  %767 = vst.msk [vmem:[%s3 + $0x28] sm:$0xff] %vm253, %v735
  %768 = vst [vmem:[%s3 + $0x30] sm:$0xff] %v736
  %769 = vst.msk [vmem:[%s3 + $0x38] sm:$0xff] %vm253, %v737
  %770 = vst [vmem:[%s3 + $0x40] sm:$0xff] %v738
  %771 = vst.msk [vmem:[%s3 + $0x48] sm:$0xff] %vm253, %v739
  %772 = vst [vmem:[%s3 + $0x50] sm:$0xff] %v740
  %773 = vst.msk [vmem:[%s3 + $0x58] sm:$0xff] %vm253, %v741
  %774 = vst [vmem:[%s3 + $0x60] sm:$0xff] %v742
  %775 = vst.msk [vmem:[%s3 + $0x68] sm:$0xff] %vm253, %v743
  %776 = vst [vmem:[%s3 + $0x70] sm:$0xff] %v744
  %777 = vst.msk [vmem:[%s3 + $0x78] sm:$0xff] %vm253, %v745
  %778 = vst [vmem:[%s3 + $0x80] sm:$0xff] %v746
  %779 = vst.msk [vmem:[%s3 + $0x88] sm:$0xff] %vm253, %v747
  %780 = vst [vmem:[%s3 + $0x90] sm:$0xff] %v748
  %781 = vst.msk [vmem:[%s3 + $0x98] sm:$0xff] %vm253, %v749
  %782 = vst [vmem:[%s3 + $0xa0] sm:$0xff] %v750
  %783 = vst.msk [vmem:[%s3 + $0xa8] sm:$0xff] %vm253, %v751
  %784 = vst [vmem:[%s3 + $0xb0] sm:$0xff] %v752
  %785 = vst.msk [vmem:[%s3 + $0xb8] sm:$0xff] %vm253, %v753
  %786 = vst [vmem:[%s3 + $0xc0] sm:$0xff] %v754
  %787 = vst.msk [vmem:[%s3 + $0xc8] sm:$0xff] %vm253, %v755
  %788 = vst [vmem:[%s3 + $0xd0] sm:$0xff] %v756
  %789 = vst.msk [vmem:[%s3 + $0xd8] sm:$0xff] %vm253, %v757
  %790 = vst [vmem:[%s3 + $0xe0] sm:$0xff] %v758
  %791 = vst.msk [vmem:[%s3 + $0xe8] sm:$0xff] %vm253, %v759
  %792 = vst [vmem:[%s3 + $0xf0] sm:$0xff] %v760
  %793 = vst.msk [vmem:[%s3 + $0xf8] sm:$0xff] %vm253, %v761
  // Predicated region
  $region14: #{tpu_custom_call.1} parent=0 // pred_check
    _
  $region15: #{tpu_custom_call.1} parent=0 // pred_check_branch
    %795 = sbr.rel (0) target = $region17
  $region16: #{tpu_custom_call.1} parent=0 // pred_region
    _
  $region17: #{tpu_custom_call.1} parent=0 // pred_fallthru
    _
  // Predicated region
  $region18: #{tpu_custom_call.1} parent=0 // pred_check
    _
  $region19: #{tpu_custom_call.1} parent=0 // pred_check_branch
    %797 = sbr.rel (0) target = $region21
  $region20: #{tpu_custom_call.1} parent=0 // pred_region
    _
  $region21: #{tpu_custom_call.1} parent=0 // pred_fallthru
    _

</llo_original>
